<compile_context>
chip_gen: v7x
topology: tpu7x:2x2x1
jax: 0.10.0
libtpu: 0.0.40
codegen_flags: <defaults>
</compile_context>

<pallas_src>
import functools

import jax
import jax.numpy as jnp
import numpy as np
from jax.experimental import pallas as pl
from jax.experimental.pallas import tpu as pltpu

_SUB = 32            # sublanes per int8 keep tile (native int8 tiling is (32, 128))
_MAX_TILE_C = 16384  # lanes per tile -> up to 32 * 16384 = 524288 edges per tile


def _round_up(v, m):
    return -(-v // m) * m


def _drop_edge_keep_kernel(params_ref, keep_ref, *, c_total):
    """Per-tile int8 keep mask. keep_ref block is (_SUB, TILE_C).

    params_ref (SMEM, int32[2]) = [seed, thresh] with thresh = floor(p * 2^24).
    keep[s, c] = 1 iff hash(seed, edge_id) top-24-bits > thresh, where
    edge_id = s * c_total + c (row-major flat index of the (32, c_total) keep
    array -- identical to the edge's position in ei regardless of tiling).
    """
    tile_c = keep_ref.shape[1]
    c0 = pl.program_id(0) * tile_c

    col = c0 + jax.lax.broadcasted_iota(jnp.int32, (_SUB, tile_c), 1)
    row = jax.lax.broadcasted_iota(jnp.int32, (_SUB, tile_c), 0)
    edge = row * c_total + col

    # lowbias32-style integer hash of (seed, edge_id) -> 32 uniform-ish bits.
    # Portable (no pltpu.prng_*): lowers under interpret mode and Mosaic alike.
    # Final xorshift dropped -- only the top 24 bits feed the keep decision.
    seed = params_ref[0]
    thresh = params_ref[1]
    s = seed.astype(jnp.uint32) * jnp.uint32(0x9E3779B9)
    x = edge.astype(jnp.uint32) + s
    x = x ^ (x >> 16)
    x = x * jnp.uint32(0x7FEB352D)
    x = x ^ (x >> 15)
    x = x * jnp.uint32(0x846CA68B)

    r = (x >> 8).astype(jnp.int32)          # top 24 bits, nonnegative
    keep_ref[...] = (r > thresh).astype(jnp.int8)


def drop_edge(ei, p, seed, training=True):
    """Pallas implementation of DropEdge.forward.

    Returns (padded_ei, num_kept):
      padded_ei : (2, E) int32 -- kept edges compacted to the front (original
                  order preserved), remaining columns filled with -1.
      num_kept  : int32 scalar -- number of valid columns.
    Eval mode returns (ei, E) unchanged, matching the PyTorch module.
    Note: the -1 pad sentinel assumes node indices are nonnegative.
    """
    ei = ei.astype(jnp.int32)
    E = ei.shape[1]

    if not training or E == 0:
        return ei, jnp.int32(E)

    thresh = min(int(float(p) * (1 << 24)), 1 << 24)
    seed = jnp.asarray(seed, dtype=jnp.int32).reshape(())
    params = jnp.stack([seed, jnp.int32(thresh)])

    # Lane-dense int8 tiling over the edge axis. Ensure >= 2 tiles when there
    # is enough work so the "parallel" grid axis can shard across both v7x
    # TensorCores; harmless on single-TC v5e/v6e.
    c_needed = _round_up(E, _SUB) // _SUB            # ceil(E / 32) lanes needed
    min_tiles = 2 if c_needed > 128 else 1
    tile_c = min(_MAX_TILE_C, _round_up(-(-c_needed // min_tiles), 128))
    num_tiles = -(-c_needed // tile_c)
    c_total = num_tiles * tile_c                     # padded lane count

    kernel = functools.partial(_drop_edge_keep_kernel, c_total=c_total)

    keep2d = pl.pallas_call(
        kernel,
        out_shape=jax.ShapeDtypeStruct((_SUB, c_total), jnp.int8),
        grid=(num_tiles,),
        in_specs=[pl.BlockSpec(memory_space=pltpu.MemorySpace.SMEM)],  # [seed, thresh]
        out_specs=pl.BlockSpec((_SUB, tile_c), lambda i: (0, i)),
        compiler_params=pltpu.CompilerParams(
            dimension_semantics=("parallel",),
            vmem_limit_bytes=32 * 1024 * 1024),
    )(params)

    # Row-major flatten matches the kernel's edge-id layout; slice off padding
    # and upcast before the cumsum (int8 would overflow for E > 127).
    keep = keep2d.reshape(-1)[:E].astype(jnp.int32)
    csum = jnp.cumsum(keep)
    num_kept = csum[E - 1]

    # Gather-based compaction (no minor-dim scatter): output column j takes
    # the (j+1)-th kept edge, i.e. the first index where the inclusive cumsum
    # reaches j+1.
    cols = jnp.arange(E, dtype=jnp.int32)
    src = jnp.searchsorted(csum, cols + 1, side="left").astype(jnp.int32)
    valid = cols < num_kept
    src = jnp.where(valid, src, 0)
    padded = jnp.where(valid[None, :], jnp.take(ei, src, axis=1), -1)
    return padded, num_kept


def _reference_keep(E, seed, p):
    """Same hash in plain numpy (uint64 arithmetic masked to 32 bits)."""
    m = np.uint64(0xFFFFFFFF)
    s = np.uint64((int(seed) * 0x9E3779B9) & 0xFFFFFFFF)
    x = (np.arange(E, dtype=np.uint64) + s) & m
    x ^= x >> np.uint64(16)
    x = (x * np.uint64(0x7FEB352D)) & m
    x ^= x >> np.uint64(15)
    x = (x * np.uint64(0x846CA68B)) & m
    r = (x >> np.uint64(8)).astype(np.int64)
    return r > int(float(p) * (1 << 24))


def _check(ei, p, seed_val, num_nodes):
    E = ei.shape[1]
    padded_ei, num_kept = drop_edge(ei, p, seed_val, training=True)
    padded_ei = np.asarray(jax.block_until_ready(padded_ei))
    n = int(jax.block_until_ready(num_kept))

    # Independent reference: same hash + compaction in numpy.
    keep_ref = _reference_keep(E, seed_val, p)
    ei_np = np.asarray(ei)
    kept_cols = ei_np[:, keep_ref]
    n_ref = kept_cols.shape[1]
    ref_padded = np.full((2, E), -1, dtype=np.int32)
    ref_padded[:, :n_ref] = kept_cols

    assert 0 <= n <= E
    assert n == n_ref, (n, n_ref)
    assert np.array_equal(padded_ei, ref_padded)
    assert bool(np.all(padded_ei[:, n:] == -1))
    assert bool(np.all((padded_ei[:, :n] >= 0) & (padded_ei[:, :n] < num_nodes)))


if __name__ == "__main__":
    key = jax.random.PRNGKey(0)
    num_nodes = 16
    p = 0.3          # drop probability (DropEdge.__init__ arg)
    seed_val = 42

    # E=128: single-tile path; E=9000: two parallel tiles (multi-tile path).
    for E in (128, 9000):
        k_src, k_dst, key = jax.random.split(key, 3)
        src = jax.random.randint(k_src, (E,), 0, num_nodes, dtype=jnp.int32)
        dst = jax.random.randint(k_dst, (E,), 0, num_nodes, dtype=jnp.int32)
        ei = jnp.stack([src, dst], axis=0)          # (2, E) edge index
        _check(ei, p, seed_val, num_nodes)

    # Eval mode is identity.
    ei_small = jnp.stack([jnp.arange(8, dtype=jnp.int32),
                          jnp.arange(8, dtype=jnp.int32)], axis=0)
    eval_ei, eval_n = drop_edge(ei_small, p, seed_val, training=False)
    assert bool(jnp.all(eval_ei == ei_small)) and int(eval_n) == 8

    print("KERNEL_OK")
</pallas_src>

<mosaic_0001>
module attributes {stable_mosaic.version = 11 : i64} {
  func.func @_drop_edge_keep_kernel(%arg0: i32, %arg1: memref<2xi32, #tpu.memory_space<smem>>, %arg2: memref<32x128xi8, #tpu.memory_space<vmem>>) attributes {dimension_semantics = [#tpu.dimension_semantics<parallel>], iteration_bounds = array<i64: 1>, scalar_prefetch = 0 : i64, scratch_operands = 0 : i64, tpu.core_type = #tpu.core_type<tc>, window_params = [{transform_indices = @transform_0, window_bounds = array<i64: 2>}, {transform_indices = @transform_1, window_bounds = array<i64: 32, 128>}]} {
    %c128_i32 = arith.constant 128 : i32
    %0 = arith.muli %arg0, %c128_i32 : i32
    %1 = tpu.iota {dimensions = array<i32: 1>} : vector<32x128xi32>
    %2 = vector.broadcast %0 : i32 to vector<32x128xi32>
    %3 = arith.addi %2, %1 : vector<32x128xi32>
    %4 = tpu.iota {dimensions = array<i32: 0>} : vector<32x128xi32>
    %c128_i32_0 = arith.constant 128 : i32
    %5 = vector.broadcast %c128_i32_0 : i32 to vector<32x128xi32>
    %6 = arith.muli %4, %5 : vector<32x128xi32>
    %7 = arith.addi %6, %3 : vector<32x128xi32>
    %c0 = arith.constant 0 : index
    %8 = memref.load %arg1[%c0] : memref<2xi32, #tpu.memory_space<smem>>
    %c1 = arith.constant 1 : index
    %9 = memref.load %arg1[%c1] : memref<2xi32, #tpu.memory_space<smem>>
    %c-1640531527_i32 = arith.constant -1640531527 : i32
    %10 = arith.muli %8, %c-1640531527_i32 : i32
    %11 = vector.broadcast %10 : i32 to vector<32x128xi32>
    %12 = arith.addi %7, %11 : vector<32x128xi32>
    %c16_i32 = arith.constant 16 : i32
    %13 = vector.broadcast %c16_i32 : i32 to vector<32x128xi32>
    %14 = arith.shrui %12, %13 : vector<32x128xi32>
    %15 = arith.xori %12, %14 : vector<32x128xi32>
    %c2146121005_i32 = arith.constant 2146121005 : i32
    %16 = vector.broadcast %c2146121005_i32 : i32 to vector<32x128xi32>
    %17 = arith.muli %15, %16 : vector<32x128xi32>
    %c15_i32 = arith.constant 15 : i32
    %18 = vector.broadcast %c15_i32 : i32 to vector<32x128xi32>
    %19 = arith.shrui %17, %18 : vector<32x128xi32>
    %20 = arith.xori %17, %19 : vector<32x128xi32>
    %c-2073254261_i32 = arith.constant -2073254261 : i32
    %21 = vector.broadcast %c-2073254261_i32 : i32 to vector<32x128xi32>
    %22 = arith.muli %20, %21 : vector<32x128xi32>
    %c8_i32 = arith.constant 8 : i32
    %23 = vector.broadcast %c8_i32 : i32 to vector<32x128xi32>
    %24 = arith.shrui %22, %23 : vector<32x128xi32>
    %25 = vector.broadcast %9 : i32 to vector<32x128xi32>
    %26 = arith.cmpi sgt, %24, %25 : vector<32x128xi32>
    %27 = arith.extui %26 : vector<32x128xi1> to vector<32x128xi8>
    %c0_1 = arith.constant 0 : index
    %c0_2 = arith.constant 0 : index
    %28 = vector.load %arg2[%c0_1, %c0_2] : memref<32x128xi8, #tpu.memory_space<vmem>>, vector<32x128xi8>
    tpu.vector_store %arg2[%c0_1, %c0_2], %27 {strides = array<i32>} : memref<32x128xi8, #tpu.memory_space<vmem>>, vector<32x128xi8>,
    return
  }
  func.func @transform_0(%arg0: i32) -> i32 {
    %c0_i32 = arith.constant 0 : i32
    %c0_i32_0 = arith.constant 0 : i32
    return %c0_i32 : i32
  }
  func.func @transform_1(%arg0: i32) -> (i32, i32) {
    %c0_i32 = arith.constant 0 : i32
    %c0_i32_0 = arith.constant 0 : i32
    return %c0_i32, %arg0 : i32, i32
  }
}

</mosaic_0001>

<llo_original>
// kernel: tpu_custom_call.1
$region0: #{tpu_custom_call.1}
  #allocation0 [shape = 'u32[]', space=smem, size = 0x4, offset = 0x4, fixed_abs, tag = 'smem constant byte address 0x4 - core index']
  #allocation1 [shape = 'u32[144,128]{1,0:T(1,128)}', space=vmem, size = 0x12000, scoped, tag = 'internal scratch']
  %s0 = inlined_call_operand.hbm [shape: s32[2], index: 0, kind: input, shape index: {}]
  %s1 = inlined_call_operand.hbm [shape: s8[32,128], index: 1, kind: output, shape index: {}]
  %s2 = sld [smem:[#allocation0]]
  $region18: #{tpu_custom_call.1} parent=0
    _
  %s4 = ssub.s32 1, %s2
  %s5 = scalar_select 0, %s4, %s2
  $region1: #{tpu_custom_call.1} parent=0
    #allocation2 [shape = 'u8[512]{0}', space=smem, size = 0x200, scoped, tag = 'input window, operand 0, single buffered']
    #allocation3 [shape = 's32[1]{0}', space=sflag, size = 0x4, scoped, tag = 'scoped memory for tpu_custom_call.1']
    #allocation4 [shape = 's32[1]{0}', space=sflag, size = 0x4, scoped, tag = 'scoped memory for tpu_custom_call.1']
    #allocation5 [shape = 'u8[4096]{0}', space=vmem, size = 0x1000, scoped, tag = 'output window, operand 0, single buffered']
    %6 = vsyncpa [#allocation4], 0
    %7 = vsyncpa [#allocation3], 0
    // Predicated region
    $region2: #{tpu_custom_call.1} parent=1 // pred_check
      _
    $region3: #{tpu_custom_call.1} parent=1 // pred_check_branch
      %9 = sbr.rel (0) target = $region5
    $region4: #{tpu_custom_call.1} parent=1 // pred_region
      %s11 = ssub.s32 16, 16
      %12 = vsyncadd [#allocation4], %s11
      %15 = dma.hbm_to_smem %s0, 16, [#allocation2], [#allocation4]
    $region5: #{tpu_custom_call.1} parent=1 // pred_fallthru
      _
    // Predicated region
    $region6: #{tpu_custom_call.1} parent=1 // pred_check
      _
    $region7: #{tpu_custom_call.1} parent=1 // pred_check_branch
      %17 = sbr.rel (0) target = $region9
    $region8: #{tpu_custom_call.1} parent=1 // pred_region
      %18 = dma.done [#allocation4], 16
    $region9: #{tpu_custom_call.1} parent=1 // pred_fallthru
      _
    %19 = sfence
    %s22 = smul.u32 0, 128
    %v23 = vlaneseq
    %v24 = vand.u32 %v23, 127
    %v25 = vstv %s22
    %v26 = vadd.s32 %v25, %v24
    %v27 = vlaneseq
    %v28 = vshrl.u32 %v27, 7
    %v29 = vadd.s32 %v28, 8
    %v30 = vadd.s32 %v28, 16
    %v31 = vadd.s32 %v28, 24
    %v32 = vmul.u32 %v28, 128
    %v33 = vmul.u32 %v29, 128
    %v34 = vmul.u32 %v30, 128
    %v35 = vmul.u32 %v31, 128
    %v36 = vadd.s32 %v32, %v26
    %v37 = vadd.s32 %v33, %v26
    %v38 = vadd.s32 %v34, %v26
    %v39 = vadd.s32 %v35, %v26
    %s40 = sld [smem:[#allocation2]]
    %s41 = sld [smem:[#allocation2 + $0x1]]
    %s42 = smul.u32 %s40, 2654435769
    %v43 = vstv %s42
    %v44 = vadd.s32 %v36, %v43
    %v45 = vadd.s32 %v37, %v43
    %v46 = vadd.s32 %v38, %v43
    %v47 = vadd.s32 %v39, %v43
    %v48 = vshrl.u32 %v44, 16
    %v49 = vshrl.u32 %v45, 16
    %v50 = vshrl.u32 %v46, 16
    %v51 = vshrl.u32 %v47, 16
    %v52 = vxor.u32 %v44, %v48
    %v53 = vxor.u32 %v45, %v49
    %v54 = vxor.u32 %v46, %v50
    %v55 = vxor.u32 %v47, %v51
    %v56 = vmul.u32 %v52, 2146121005
    %v57 = vmul.u32 %v53, 2146121005
    %v58 = vmul.u32 %v54, 2146121005
    %v59 = vmul.u32 %v55, 2146121005
    %v60 = vshrl.u32 %v56, 15
    %v61 = vshrl.u32 %v57, 15
    %v62 = vshrl.u32 %v58, 15
    %v63 = vshrl.u32 %v59, 15
    %v64 = vxor.u32 %v56, %v60
    %v65 = vxor.u32 %v57, %v61
    %v66 = vxor.u32 %v58, %v62
    %v67 = vxor.u32 %v59, %v63
    %v68 = vmul.u32 %v64, 2221713035
    %v69 = vmul.u32 %v65, 2221713035
    %v70 = vmul.u32 %v66, 2221713035
    %v71 = vmul.u32 %v67, 2221713035
    %v72 = vshrl.u32 %v68, 8
    %v73 = vshrl.u32 %v69, 8
    %v74 = vshrl.u32 %v70, 8
    %v75 = vshrl.u32 %v71, 8
    %v76 = vstv %s41
    %vm77 = vcmp.gt.s32.totalorder %v72, %v76
    %vm78 = vcmp.gt.s32.totalorder %v73, %v76
    %vm79 = vcmp.gt.s32.totalorder %v74, %v76
    %vm80 = vcmp.gt.s32.totalorder %v75, %v76
    %vm81 = vmpackc.low %vm78, %vm77
    %vm82 = vmpackc.low %vm80, %vm79
    %vm83 = vmpackc.even %vm82, %vm81
    %v84 = vsel %vm83, 16843009, 0
    %85 = vst [vmem:[#allocation5] sm:$0xff] %v84
    // Predicated region
    $region10: #{tpu_custom_call.1} parent=1 // pred_check
      _
    $region11: #{tpu_custom_call.1} parent=1 // pred_check_branch
      %87 = sbr.rel (0) target = $region13
    $region12: #{tpu_custom_call.1} parent=1 // pred_region
      %s89 = ssub.s32 128, 128
      %90 = vsyncadd [#allocation3], %s89
      %s92 = sshll.u32 [#allocation5], 4
      %s93 = int_to_ptr.vmem [resolvable:$true] %s92
      %95 = dma.vmem_to_hbm [thread:$0]  %s93, 128, %s1, [#allocation3]
    $region13: #{tpu_custom_call.1} parent=1 // pred_fallthru
      _
    // Predicated region
    $region14: #{tpu_custom_call.1} parent=1 // pred_check
      _
    $region15: #{tpu_custom_call.1} parent=1 // pred_check_branch
      %97 = sbr.rel (0) target = $region17
    $region16: #{tpu_custom_call.1} parent=1 // pred_region
      %98 = dma.done [#allocation3], 128
    $region17: #{tpu_custom_call.1} parent=1 // pred_fallthru
      _
    %99 = vsyncpa [#allocation3], 1
    %100 = vsyncpa [#allocation4], 1

</llo_original>
